<compile_context>
chip_gen: v7x
topology: tpu7x:2x2x1
jax: 0.10.0
libtpu: 0.0.40
codegen_flags: <defaults>
</compile_context>

<pallas_src>
import math

import jax
import jax.numpy as jnp
import numpy as np
from jax.experimental import pallas as pl
from jax.experimental.pallas import tpu as pltpu


# ---------------------------------------------------------------------------
# Fused kernel: 2x2 max/avg pool mix + folded (conv o classifier) contraction,
# accumulated across feature tiles into the resident (TN, K) output block.
# ---------------------------------------------------------------------------
def _fused_head_kernel(alpha_ref, xw_ref, weff_ref, beff_ref, out_ref):
    # alpha_ref : SMEM (1,)          pooling mix coefficient
    # xw_ref    : VMEM (4, TN, TF)   the 4 elements of each 2x2 window,
    #                                feature axis (c, i, j) lane-dense
    # weff_ref  : VMEM (K, TF)       folded conv+classifier weight, lane-dense TF
    # beff_ref  : VMEM (1, K)        folded bias (f32)
    # out_ref   : VMEM (TN, K)       resident f32 accumulator / output block
    fb = pl.program_id(1)

    @pl.when(fb == 0)
    def _init():
        # Bias folded into the accumulator init -> no finalize pass needed.
        out_ref[...] = jnp.broadcast_to(beff_ref[...], out_ref.shape)

    a = alpha_ref[0]
    f32 = jnp.float32
    x00 = xw_ref[0].astype(f32)
    x01 = xw_ref[1].astype(f32)
    x10 = xw_ref[2].astype(f32)
    x11 = xw_ref[3].astype(f32)
    mx = jnp.maximum(jnp.maximum(x00, x01), jnp.maximum(x10, x11))
    av = (x00 + x01 + x10 + x11) * 0.25
    pool = av + a * (mx - av)                  # == alpha*max + (1-alpha)*avg
    pool = pool.astype(weff_ref.dtype)         # bf16 weights -> native bf16 MXU

    # (TN, TF) x (K, TF)^T : single MXU contraction on the lane-dense feature
    # axis, accumulated in f32.  (Pass precision=jax.lax.Precision.HIGHEST here
    # if bit-level parity with PyTorch fp32 is required; default matched the
    # reference to <1e-4 in the sandbox.)
    out_ref[...] += jax.lax.dot_general(
        pool, weff_ref[...],
        dimension_numbers=(((1,), (1,)), ((), ())),
        preferred_element_type=jnp.float32)


# ---------------------------------------------------------------------------
# One-time (parameter-load time) weight preparation.
# ---------------------------------------------------------------------------
def prepare_params(w1, b1, w2, b2, input_hw, *, weight_dtype=jnp.float32):
    """Fold the 1x1 conv into the classifier (return_features=False path).

        cls[n,k] = b_eff[k] + sum_{c,i,j} pool[n,c,i,j] * W_eff[k, (c,i,j)]
        W_eff[k, (c,i,j)] = sum_o w2[k, (o,i,j)] * w1[o,c]
        b_eff[k]          = b2[k] + sum_{o,i,j} b1[o] * w2[k, (o,i,j)]

    W_eff is returned TRANSPOSED, (K, C*h*w), so its VMEM tiles are lane-dense
    along the long feature axis (K=num_classes only pads to 16 sublanes).
    """
    H, W = input_hw
    h, w = H // 2, W // 2
    Cout, C = int(w1.shape[0]), int(w1.shape[1])
    K = int(w2.shape[0])
    w1m = w1.reshape(Cout, C).astype(jnp.float32)
    w2r = w2.reshape(K, Cout, h, w).astype(jnp.float32)
    weff = jnp.einsum('koij,oc->kcij', w2r, w1m).reshape(K, C * h * w)
    beff = (b2.astype(jnp.float32)
            + jnp.einsum('koij,o->k', w2r, b1.astype(jnp.float32))).reshape(1, K)
    return weff.astype(weight_dtype), beff


# ---------------------------------------------------------------------------
# Hardware queries (generation-aware budgets) with safe fallbacks.
# ---------------------------------------------------------------------------
def _vmem_capacity_bytes():
    try:
        return int(pltpu.get_tpu_info().vmem_capacity_bytes)
    except Exception:
        return 128 * 1024 * 1024          # v5e/v6e default


def _num_tensorcores():
    try:
        info = pltpu.get_tpu_info()
        for attr in ("num_cores", "num_tensorcores", "tensorcores_per_chip",
                     "cores_per_chip", "core_count"):
            v = getattr(info, attr, None)
            if v:
                return int(v)
    except Exception:
        pass
    try:
        return max(1, int(getattr(jax.local_devices()[0], "num_cores", 1)))
    except Exception:
        return 1


def _round_up(v, m):
    return ((v + m - 1) // m) * m


# ---------------------------------------------------------------------------
# Tile picker: padded-VMEM accounting (sublane/lane rounding, double buffers).
# ---------------------------------------------------------------------------
def _pick_tiles(N, C, hw, K, itemsize, budget_bytes, *,
                tn_cap=128, min_batch_blocks=1, tf_override=None):
    M = C * hw
    if tf_override is not None:
        tf_candidates = [tf_override]
    else:
        tf_candidates = sorted({tc * hw for tc in range(1, C + 1)
                                if C % tc == 0
                                and ((tc * hw) % 128 == 0 or tc * hw == M)})
        if not tf_candidates:
            tf_candidates = [M]

    if N <= 8:
        tn_candidates = [N]
    else:
        tn0 = min((N // 8) * 8, tn_cap)
        if min_batch_blocks > 1:
            # Guarantee >= min_batch_blocks "parallel" batch blocks (v7x 2nd TC).
            tn0 = min(tn0, max(8, _round_up(-(-N // min_batch_blocks), 8)))
        tn_candidates = list(range(tn0, 7, -8))

    sub = 16 if itemsize == 2 else 8       # sublane tile for the stream dtype

    def padded_need(tn, tf):
        tn_x = _round_up(tn, sub)          # xw block sublane padding
        k_w = _round_up(K, sub)            # weff block sublane padding
        dbl_inputs = 2 * itemsize * (4 * tn_x + k_w) * tf      # double-buffered
        out_blk = 2 * 4 * _round_up(tn, 8) * _round_up(K, 128)  # lane-padded out
        bias_blk = 2 * 4 * 8 * 128
        return dbl_inputs + out_blk + bias_blk

    for tn in tn_candidates:
        fits = [tf for tf in tf_candidates if padded_need(tn, tf) <= budget_bytes]
        if fits:
            return tn, max(fits)
    return tn_candidates[-1], tf_candidates[0]


# ---------------------------------------------------------------------------
# Forward wrapper.
# ---------------------------------------------------------------------------
def downsample_conv_head_forward(x, alpha, weff, beff, *,
                                 channels_per_tile=None,
                                 stream_dtype=None):
    """x: (N, C, H, W) NCHW; alpha: (1,); weff (K, C*h*w) / beff (1, K) from
    prepare_params.  stream_dtype controls the dtype of the pooled-window HBM
    stream (default: weff.dtype; bf16 halves the dominant HBM traffic)."""
    N, C, H, W = x.shape
    assert H % 2 == 0 and W % 2 == 0
    h, w = H // 2, W // 2
    hw = h * w
    M = C * hw                                  # flattened (c, i, j) features
    K = int(beff.shape[-1])
    assert weff.shape == (K, M), "weff must be the lane-dense (K, C*h*w) folded weight"
    if stream_dtype is None:
        stream_dtype = weff.dtype
    itemsize = jnp.dtype(stream_dtype).itemsize

    # --- 2x2 window de-interleave: one fused XLA rearrangement of x ----------
    # Lane-dense (4, N, C*h*w): window element leading, batch on sublanes, the
    # big flattened feature axis on lanes.  Cast to the stream dtype here so
    # the kernel-side read (the dominant stream) can be bf16.
    # TODO(synk): fold this de-interleave into the kernel (lane stride-2 pl.ds
    # slices / pltpu.roll over a raw (N, C*h, 2w) tile) to drop this extra XLA
    # read+write pass over x; kept wrapper-side for lowering robustness.
    xw = (x.reshape(N, C, h, 2, w, 2)
           .transpose(3, 5, 0, 1, 2, 4)
           .reshape(4, N, M)
           .astype(stream_dtype))

    # --- generation-aware VMEM budget ----------------------------------------
    vmem_cap = _vmem_capacity_bytes()           # 128 MiB v5e/v6e, 64 MiB v7x
    vmem_limit = max(16 << 20, min(vmem_cap // 2, 64 << 20))
    tile_budget = (vmem_limit * 3) // 4         # headroom for Mosaic scratch

    ncores = _num_tensorcores()
    min_batch_blocks = 2 if (ncores >= 2 and N >= 16) else 1

    tf_override = None
    if channels_per_tile is not None:
        assert C % channels_per_tile == 0
        tf_override = channels_per_tile * hw
        assert tf_override % 128 == 0 or tf_override == M, \
            "feature tile must be lane-aligned"

    TN, tf = _pick_tiles(N, C, hw, K, itemsize, tile_budget,
                         min_batch_blocks=min_batch_blocks,
                         tf_override=tf_override)
    num_btiles = pl.cdiv(N, TN)
    num_ftiles = M // tf

    alpha = jnp.asarray(alpha, jnp.float32).reshape(1)
    beff = jnp.asarray(beff, jnp.float32).reshape(1, K)

    # Partial trailing batch block (N % TN != 0): the padded xw rows are
    # undefined but only feed output rows >= N, which Pallas masks on
    # writeback (all math is row-wise), so this is benign.
    return pl.pallas_call(
        _fused_head_kernel,
        out_shape=jax.ShapeDtypeStruct((N, K), jnp.float32),
        grid=(num_btiles, num_ftiles),
        in_specs=[
            pl.BlockSpec(memory_space=pltpu.MemorySpace.SMEM),       # alpha
            pl.BlockSpec((4, TN, tf), lambda nb, fb: (0, nb, fb)),   # window slabs
            pl.BlockSpec((K, tf), lambda nb, fb: (0, fb)),           # W_eff tile
            pl.BlockSpec((1, K), lambda nb, fb: (0, 0)),             # b_eff
        ],
        out_specs=pl.BlockSpec((TN, K), lambda nb, fb: (nb, 0)),
        compiler_params=pltpu.CompilerParams(
            dimension_semantics=("parallel", "arbitrary"),
            vmem_limit_bytes=int(vmem_limit),
        ),
    )(alpha, xw, weff, beff)


# ---------------------------------------------------------------------------
# Pure-JAX reference (mirrors the PyTorch forward exactly) for validation.
# ---------------------------------------------------------------------------
def _reference_forward(x, alpha, w1, b1, w2, b2):
    N, C, H, W = x.shape
    xr = x.reshape(N, C, H // 2, 2, W // 2, 2)
    mx = xr.max(axis=(3, 5))
    av = xr.mean(axis=(3, 5))
    pool = alpha[0] * mx + (1.0 - alpha[0]) * av
    Cout = w1.shape[0]
    conv = jnp.einsum('oc,nchw->nohw', w1.reshape(Cout, C), pool) \
        + b1[None, :, None, None]
    feat = conv.reshape(N, -1)
    return feat @ w2.T + b2


if __name__ == "__main__":
    # Module config (small, consistent with the PyTorch __init__):
    input_features = (4, 16, 16)      # (C, H, W)
    num_classes = 10
    downsample_factor = 2
    batch = 2

    C, H, W = input_features
    Cout = C // downsample_factor
    num_input_features = math.prod(input_features)
    F = num_input_features // (downsample_factor * 4)   # == Cout * (H//2) * (W//2)

    key = jax.random.PRNGKey(0)
    kx, ka, kw1, kb1, kw2, kb2 = jax.random.split(key, 6)

    x = jax.random.normal(kx, (batch, C, H, W), dtype=jnp.float32)
    alpha = jax.random.uniform(ka, (1,), dtype=jnp.float32)                 # nn.Parameter(torch.rand(1))
    w1 = jax.random.normal(kw1, (Cout, C, 1, 1), dtype=jnp.float32) * 0.1   # Conv2d weight
    b1 = jax.random.normal(kb1, (Cout,), dtype=jnp.float32) * 0.1           # Conv2d bias
    w2 = jax.random.normal(kw2, (num_classes, F), dtype=jnp.float32) * 0.1  # Linear weight
    b2 = jax.random.normal(kb2, (num_classes,), dtype=jnp.float32) * 0.1    # Linear bias

    ref = _reference_forward(x, alpha, w1, b1, w2, b2)

    # (1) f32 path, channels_per_tile=2 -> two feature tiles on the toy shape,
    #     exercising the init / accumulate reduction path.
    weff32, beff = prepare_params(w1, b1, w2, b2, (H, W))
    out32 = downsample_conv_head_forward(x, alpha, weff32, beff,
                                         channels_per_tile=2)
    out32 = jax.block_until_ready(out32)
    np.testing.assert_allclose(np.asarray(out32), np.asarray(ref),
                               rtol=2e-4, atol=2e-4)

    # (2) bf16 streaming path (halved xw / W_eff HBM traffic), auto tiling ->
    #     single feature tile (init+accumulate in one step).
    weffbf, _ = prepare_params(w1, b1, w2, b2, (H, W),
                               weight_dtype=jnp.bfloat16)
    outbf = downsample_conv_head_forward(x, alpha, weffbf, beff,
                                         stream_dtype=jnp.bfloat16)
    outbf = jax.block_until_ready(outbf)
    np.testing.assert_allclose(np.asarray(outbf), np.asarray(ref),
                               rtol=1e-1, atol=1e-1)

    print("KERNEL_OK")
</pallas_src>

<mosaic_0001>
module attributes {stable_mosaic.version = 11 : i64} {
  func.func @_fused_head_kernel(%arg0: i32, %arg1: i32, %arg2: memref<1xf32, #tpu.memory_space<smem>>, %arg3: memref<4x2x128xf32, #tpu.memory_space<vmem>>, %arg4: memref<10x128xf32, #tpu.memory_space<vmem>>, %arg5: memref<1x10xf32, #tpu.memory_space<vmem>>, %arg6: memref<2x10xf32, #tpu.memory_space<vmem>>) attributes {dimension_semantics = [#tpu.dimension_semantics<parallel>, #tpu.dimension_semantics<arbitrary>], iteration_bounds = array<i64: 1, 2>, scalar_prefetch = 0 : i64, scratch_operands = 0 : i64, tpu.core_type = #tpu.core_type<tc>, window_params = [{transform_indices = @transform_0, window_bounds = array<i64: 1>}, {transform_indices = @transform_1, window_bounds = array<i64: 4, 2, 128>}, {transform_indices = @transform_2, window_bounds = array<i64: 10, 128>}, {pipeline_mode = #tpu.pipeline_mode<synchronous>, transform_indices = @transform_3, window_bounds = array<i64: 1, 10>}, {transform_indices = @transform_4, window_bounds = array<i64: 2, 10>}]} {
    %c0_i32 = arith.constant 0 : i32
    %0 = arith.cmpi eq, %arg1, %c0_i32 : i32
    %1 = arith.extui %0 : i1 to i32
    %c0_i32_0 = arith.constant 0 : i32
    %2 = arith.cmpi ne, %1, %c0_i32_0 : i32
    scf.if %2 {
      %c0_17 = arith.constant 0 : index
      %c0_18 = arith.constant 0 : index
      %29 = vector.load %arg5[%c0_17, %c0_18] : memref<1x10xf32, #tpu.memory_space<vmem>>, vector<1x10xf32>
      %30 = vector.shape_cast %29 : vector<1x10xf32> to vector<1x10xf32>
      %31 = vector.broadcast %30 : vector<1x10xf32> to vector<2x10xf32>
      %c0_19 = arith.constant 0 : index
      %c0_20 = arith.constant 0 : index
      %32 = vector.load %arg6[%c0_19, %c0_20] : memref<2x10xf32, #tpu.memory_space<vmem>>, vector<2x10xf32>
      tpu.vector_store %arg6[%c0_19, %c0_20], %31 {strides = array<i32>} : memref<2x10xf32, #tpu.memory_space<vmem>>, vector<2x10xf32>,
    } else {
    }
    %c0 = arith.constant 0 : index
    %3 = memref.load %arg2[%c0] : memref<1xf32, #tpu.memory_space<smem>>
    %c0_1 = arith.constant 0 : index
    %c0_2 = arith.constant 0 : index
    %c0_3 = arith.constant 0 : index
    %4 = vector.load %arg3[%c0_1, %c0_2, %c0_3] : memref<4x2x128xf32, #tpu.memory_space<vmem>>, vector<1x2x128xf32>
    %5 = vector.shape_cast %4 : vector<1x2x128xf32> to vector<2x128xf32>
    %c1 = arith.constant 1 : index
    %c0_4 = arith.constant 0 : index
    %c0_5 = arith.constant 0 : index
    %6 = vector.load %arg3[%c1, %c0_4, %c0_5] : memref<4x2x128xf32, #tpu.memory_space<vmem>>, vector<1x2x128xf32>
    %7 = vector.shape_cast %6 : vector<1x2x128xf32> to vector<2x128xf32>
    %c2 = arith.constant 2 : index
    %c0_6 = arith.constant 0 : index
    %c0_7 = arith.constant 0 : index
    %8 = vector.load %arg3[%c2, %c0_6, %c0_7] : memref<4x2x128xf32, #tpu.memory_space<vmem>>, vector<1x2x128xf32>
    %9 = vector.shape_cast %8 : vector<1x2x128xf32> to vector<2x128xf32>
    %c3 = arith.constant 3 : index
    %c0_8 = arith.constant 0 : index
    %c0_9 = arith.constant 0 : index
    %10 = vector.load %arg3[%c3, %c0_8, %c0_9] : memref<4x2x128xf32, #tpu.memory_space<vmem>>, vector<1x2x128xf32>
    %11 = vector.shape_cast %10 : vector<1x2x128xf32> to vector<2x128xf32>
    %12 = arith.maximumf %5, %7 : vector<2x128xf32>
    %13 = arith.maximumf %9, %11 : vector<2x128xf32>
    %14 = arith.maximumf %12, %13 : vector<2x128xf32>
    %15 = arith.addf %5, %7 : vector<2x128xf32>
    %16 = arith.addf %15, %9 : vector<2x128xf32>
    %17 = arith.addf %16, %11 : vector<2x128xf32>
    %cst = arith.constant 2.500000e-01 : f32
    %18 = vector.broadcast %cst : f32 to vector<2x128xf32>
    %19 = arith.mulf %17, %18 : vector<2x128xf32>
    %20 = arith.subf %14, %19 : vector<2x128xf32>
    %21 = vector.broadcast %3 : f32 to vector<2x128xf32>
    %22 = arith.mulf %21, %20 : vector<2x128xf32>
    %23 = arith.addf %19, %22 : vector<2x128xf32>
    %c0_10 = arith.constant 0 : index
    %c0_11 = arith.constant 0 : index
    %24 = vector.load %arg6[%c0_10, %c0_11] : memref<2x10xf32, #tpu.memory_space<vmem>>, vector<2x10xf32>
    %c0_12 = arith.constant 0 : index
    %c0_13 = arith.constant 0 : index
    %25 = vector.load %arg4[%c0_12, %c0_13] : memref<10x128xf32, #tpu.memory_space<vmem>>, vector<10x128xf32>
    %cst_14 = arith.constant dense<0.000000e+00> : vector<2x10xf32>
    %26 = tpu.matmul %23, %25, %cst_14 {dimension_numbers = #tpu.dot_dimension_numbers<[1], [1], [0], [0], [0, 0, 1, 0], [], []>} : vector<2x128xf32>, vector<10x128xf32>, vector<2x10xf32> -> vector<2x10xf32>
    %27 = arith.addf %24, %26 : vector<2x10xf32>
    %c0_15 = arith.constant 0 : index
    %c0_16 = arith.constant 0 : index
    %28 = vector.load %arg6[%c0_15, %c0_16] : memref<2x10xf32, #tpu.memory_space<vmem>>, vector<2x10xf32>
    tpu.vector_store %arg6[%c0_15, %c0_16], %27 {strides = array<i32>} : memref<2x10xf32, #tpu.memory_space<vmem>>, vector<2x10xf32>,
    return
  }
  func.func @transform_0(%arg0: i32, %arg1: i32) -> i32 {
    %c0_i32 = arith.constant 0 : i32
    %c0_i32_0 = arith.constant 0 : i32
    return %c0_i32 : i32
  }
  func.func @transform_1(%arg0: i32, %arg1: i32) -> (i32, i32, i32) {
    %c0_i32 = arith.constant 0 : i32
    %c0_i32_0 = arith.constant 0 : i32
    return %c0_i32, %arg0, %arg1 : i32, i32, i32
  }
  func.func @transform_2(%arg0: i32, %arg1: i32) -> (i32, i32) {
    %c0_i32 = arith.constant 0 : i32
    %c0_i32_0 = arith.constant 0 : i32
    return %c0_i32, %arg1 : i32, i32
  }
  func.func @transform_3(%arg0: i32, %arg1: i32) -> (i32, i32) {
    %c0_i32 = arith.constant 0 : i32
    %c0_i32_0 = arith.constant 0 : i32
    %c0_i32_1 = arith.constant 0 : i32
    return %c0_i32, %c0_i32_0 : i32, i32
  }
  func.func @transform_4(%arg0: i32, %arg1: i32) -> (i32, i32) {
    %c0_i32 = arith.constant 0 : i32
    %c0_i32_0 = arith.constant 0 : i32
    return %arg0, %c0_i32 : i32, i32
  }
}

</mosaic_0001>

<llo_original>
// kernel: tpu_custom_call.1
$region0: #{tpu_custom_call.1}
  #allocation0 [shape = 'u32[]', space=smem, size = 0x4, offset = 0x4, fixed_abs, tag = 'smem constant byte address 0x4 - core index']
  #allocation1 [shape = 'u32[144,128]{1,0:T(1,128)}', space=vmem, size = 0x12000, scoped, tag = 'internal scratch']
  #allocation2 [shape = 'f32[1]{0:T(128)S(6)}', space=smem, size = 0x200, scoped, tag = 'scoped memory for tpu_custom_call.1']
  %s0 = inlined_call_operand.<no memory space> [shape: f32[1], index: 0, kind: input, shape index: {}]
  %s1 = inlined_call_operand.hbm [shape: f32[4,2,256], index: 1, kind: input, shape index: {}]
  %s2 = inlined_call_operand.hbm [shape: f32[10,256], index: 2, kind: input, shape index: {}]
  %s3 = inlined_call_operand.hbm [shape: f32[1,10], index: 3, kind: input, shape index: {}]
  %s4 = inlined_call_operand.hbm [shape: f32[2,10], index: 4, kind: output, shape index: {}]
  %s5 = sld [smem:[#allocation0]]
  $region65: #{tpu_custom_call.1} parent=0
    _
  %s7 = ssub.s32 1, %s5
  %s8 = scalar_select 0, %s7, %s5
  %9 = sst [smem:[#allocation2]] %s0
  $region1: #{tpu_custom_call.1} parent=0
    #allocation3 [shape = 'u8[8192]{0}', space=vmem, size = 0x2000, scoped, tag = 'input window, operand 1']
    #allocation4 [shape = 's32[2]{0}', space=sflag, size = 0x8, scoped, tag = 'scoped memory for tpu_custom_call.1']
    #allocation5 [shape = 's32[2]{0}', space=sflag, size = 0x8, scoped, tag = 'scoped memory for tpu_custom_call.1']
    #allocation6 [shape = 'u8[16384]{0}', space=vmem, size = 0x4000, scoped, tag = 'input window, operand 2']
    #allocation7 [shape = 's32[2]{0}', space=sflag, size = 0x8, scoped, tag = 'scoped memory for tpu_custom_call.1']
    #allocation8 [shape = 'u8[512]{0}', space=vmem, size = 0x400, scoped, tag = 'input window, operand 3, single buffered']
    #allocation9 [shape = 'u8[1024]{0}', space=vmem, size = 0x400, scoped, tag = 'output window, operand 0, single buffered']
    %10 = vsyncpa [#allocation4], 0
    %s11 = scalar_lea.sflag [#allocation4], 1
    %12 = vsyncpa %s11, 0
    %13 = vsyncpa [#allocation7], 0
    %s14 = scalar_lea.sflag [#allocation7], 1
    %15 = vsyncpa %s14, 0
    %16 = vsyncpa [#allocation5], 0
    loop: start=0, step=1, limit=4
    $region2: #{tpu_custom_call.1} parent=1 // loop_pre_header
      _
    $region3: #{tpu_custom_call.1} parent=1 // loop_header
      %s18 = sphi 0, %s22
      %p19 = scmp.ge.s32.totalorder %s18, 4
      %s25 = sphi 0, %s37
      %s26 = sphi 0, %s33
      %s27 = sphi 0, %s25
      %s28 = sphi 0, %s26
      %s29 = sphi 0, %s27
      %s30 = sphi 0, %s28
      %s38 = sphi 0, %s38
      %s40 = sphi 0, %s38
      %s41 = sphi 0, %s40
      %s55 = sphi 0, %s41
      %s63 = sphi 0, %s65
      %s66 = sphi 0, %s63
      %s67 = sphi 0, %s66
      %s83 = sphi 0, %s67
      %s89 = sphi 0, %s91
      %s92 = sphi 0, %s89
      %s93 = sphi 0, %s92
      %s109 = sphi 0, %s93
      %s113 = sphi 0, %s113
      %s115 = sphi 0, %s113
      %s116 = sphi 0, %s115
      %s130 = sphi 0, %s116
      %s136 = sphi 0, %s138
      %s139 = sphi 0, %s136
      %s140 = sphi 0, %s139
      %s156 = sphi 0, %s140
    $region4: #{tpu_custom_call.1} parent=1 // loop_header_branch
      %21 = sbr.rel (%p19) target = $region8
    $region5: #{tpu_custom_call.1} parent=1 // loop_body
      %s23 = ssub.s32 %s18, 1
      %s24 = ssub.s32 %s18, 2
      %s31 = sadd.s32 1, %s26
      %p32 = scmp.ge.s32.totalorder %s31, 2
      %s33 = scalar_select %p32, 0, %s31
      %s34 = sadd.s32 1, %s25
      %s35 = scalar_select %p32, %s34, %s25
      %p36 = scmp.ge.s32.totalorder %s35, 1
      %s37 = scalar_select %p36, 0, %s35
      %s39 = sadd.s32 %s38, 1
      %p42 = scmp.eq.s32.totalorder %s18, 1
      %p43 = scmp.ne.s32.totalorder %s38, %s40
      %p44 = scmp.eq.s32.totalorder %s18, 0
      %p45 = por %p43, %p44
      %p46 = scmp.ne.s32.totalorder %s38, %s40
      %p47 = scmp.eq.s32.totalorder %s23, 1
      %p48 = por %p46, %p47
      %p49 = scmp.ne.s32.totalorder %s40, %s41
      %p50 = scmp.eq.s32.totalorder %s23, 0
      %p51 = por %p49, %p50
      %p52 = scmp.ne.s32.totalorder %s40, %s41
      %p53 = scmp.eq.s32.totalorder %s24, 1
      %p54 = por %p52, %p53
      %p56 = scmp.ne.s32.totalorder %s41, %s55
      %p57 = scmp.eq.s32.totalorder %s24, 0
      %p58 = por %p56, %p57
      %s59 = ssub.s32 %s25, %s37
      %s60 = ssub.s32 %s26, %s33
      %s61 = sor.u32 %s59, %s60
      %p62 = scmp.eq.s32.totalorder %s61, 0
      %s64 = sadd.s32 %s63, 1
      %s65 = scalar_select %p62, %s63, %s64
      %p68 = pneg %p62
      %p69 = scmp.eq.s32.totalorder %s18, 1
      %p70 = por %p68, %p69
      %p71 = scmp.ne.s32.totalorder %s63, %s66
      %p72 = scmp.eq.s32.totalorder %s18, 0
      %p73 = por %p71, %p72
      %p74 = scmp.ne.s32.totalorder %s63, %s66
      %p75 = scmp.eq.s32.totalorder %s23, 1
      %p76 = por %p74, %p75
      %p77 = scmp.ne.s32.totalorder %s66, %s67
      %p78 = scmp.eq.s32.totalorder %s23, 0
      %p79 = por %p77, %p78
      %p80 = scmp.ne.s32.totalorder %s66, %s67
      %p81 = scmp.eq.s32.totalorder %s24, 1
      %p82 = por %p80, %p81
      %p84 = scmp.ne.s32.totalorder %s67, %s83
      %p85 = scmp.eq.s32.totalorder %s24, 0
      %p86 = por %p84, %p85
      %s87 = ssub.s32 %s26, %s33
      %p88 = scmp.eq.s32.totalorder %s87, 0
      %s90 = sadd.s32 %s89, 1
      %s91 = scalar_select %p88, %s89, %s90
      %p94 = pneg %p88
      %p95 = scmp.eq.s32.totalorder %s18, 1
      %p96 = por %p94, %p95
      %p97 = scmp.ne.s32.totalorder %s89, %s92
      %p98 = scmp.eq.s32.totalorder %s18, 0
      %p99 = por %p97, %p98
      %p100 = scmp.ne.s32.totalorder %s89, %s92
      %p101 = scmp.eq.s32.totalorder %s23, 1
      %p102 = por %p100, %p101
      %p103 = scmp.ne.s32.totalorder %s92, %s93
      %p104 = scmp.eq.s32.totalorder %s23, 0
      %p105 = por %p103, %p104
      %p106 = scmp.ne.s32.totalorder %s92, %s93
      %p107 = scmp.eq.s32.totalorder %s24, 1
      %p108 = por %p106, %p107
      %p110 = scmp.ne.s32.totalorder %s93, %s109
      %p111 = scmp.eq.s32.totalorder %s24, 0
      %p112 = por %p110, %p111
      %s114 = sadd.s32 %s113, 1
      %p117 = scmp.eq.s32.totalorder %s18, 1
      %p118 = scmp.ne.s32.totalorder %s113, %s115
      %p119 = scmp.eq.s32.totalorder %s18, 0
      %p120 = por %p118, %p119
      %p121 = scmp.ne.s32.totalorder %s113, %s115
      %p122 = scmp.eq.s32.totalorder %s23, 1
      %p123 = por %p121, %p122
      %p124 = scmp.ne.s32.totalorder %s115, %s116
      %p125 = scmp.eq.s32.totalorder %s23, 0
      %p126 = por %p124, %p125
      %p127 = scmp.ne.s32.totalorder %s115, %s116
      %p128 = scmp.eq.s32.totalorder %s24, 1
      %p129 = por %p127, %p128
      %p131 = scmp.ne.s32.totalorder %s116, %s130
      %p132 = scmp.eq.s32.totalorder %s24, 0
      %p133 = por %p131, %p132
      %s134 = ssub.s32 %s25, %s37
      %p135 = scmp.eq.s32.totalorder %s134, 0
      %s137 = sadd.s32 %s136, 1
      %s138 = scalar_select %p135, %s136, %s137
      %p141 = pneg %p135
      %p142 = scmp.eq.s32.totalorder %s18, 1
      %p143 = por %p141, %p142
      %p144 = scmp.ne.s32.totalorder %s136, %s139
      %p145 = scmp.eq.s32.totalorder %s18, 0
      %p146 = por %p144, %p145
      %p147 = scmp.ne.s32.totalorder %s136, %s139
      %p148 = scmp.eq.s32.totalorder %s23, 1
      %p149 = por %p147, %p148
      %p150 = scmp.ne.s32.totalorder %s139, %s140
      %p151 = scmp.eq.s32.totalorder %s23, 0
      %p152 = por %p150, %p151
      %p153 = scmp.ne.s32.totalorder %s139, %s140
      %p154 = scmp.eq.s32.totalorder %s24, 1
      %p155 = por %p153, %p154
      %p157 = scmp.ne.s32.totalorder %s140, %s156
      %p158 = scmp.eq.s32.totalorder %s24, 0
      %p159 = por %p157, %p158
      %p160 = scmp.le.s32.totalorder 1, %s18
      %p161 = scmp.lt.s32.totalorder %s18, 3
      %p162 = pnand %p160, %p161
      %p163 = pneg %p162
      // Predicated region
      $region9: #{tpu_custom_call.1} parent=5 // pred_check
        _
      $region10: #{tpu_custom_call.1} parent=5 // pred_check_branch
        %165 = sbr.rel (%p162) target = $region12
      $region11: #{tpu_custom_call.1} parent=5 // pred_region
        %s166 = ssub.s32 %s18, 1
        // Predicated region
        $region13: #{tpu_custom_call.1} parent=11 // pred_check
          %p167 = pneg %p51
        $region14: #{tpu_custom_call.1} parent=11 // pred_check_branch
          %169 = sbr.rel (%p167) target = $region16
        $region15: #{tpu_custom_call.1} parent=11 // pred_region
          _
        $region16: #{tpu_custom_call.1} parent=11 // pred_fallthru
          _
        // Predicated region
        $region17: #{tpu_custom_call.1} parent=11 // pred_check
          %p170 = pneg %p126
        $region18: #{tpu_custom_call.1} parent=11 // pred_check_branch
          %172 = sbr.rel (%p170) target = $region20
        $region19: #{tpu_custom_call.1} parent=11 // pred_region
          %s174 = ssub.s32 16, 16
          %175 = vsyncadd [#allocation7], %s174
          %s177 = sshll.u32 [#allocation8], 4
          %s178 = int_to_ptr.vmem [resolvable:$true] %s177
          %180 = dma.hbm_to_vmem [thread:$0]  %s3, 16, %s178, [#allocation7]
        $region20: #{tpu_custom_call.1} parent=11 // pred_fallthru
          _
      $region12: #{tpu_custom_call.1} parent=5 // pred_fallthru
        _
      %p181 = scmp.lt.s32.totalorder %s18, 2
      // Predicated region
      $region21: #{tpu_custom_call.1} parent=5 // pred_check
        %p182 = pneg %p181
      $region22: #{tpu_custom_call.1} parent=5 // pred_check_branch
        %184 = sbr.rel (%p182) target = $region24
      $region23: #{tpu_custom_call.1} parent=5 // pred_region
        // Predicated region
        $region25: #{tpu_custom_call.1} parent=23 // pred_check
          %p185 = pneg %p73
        $region26: #{tpu_custom_call.1} parent=23 // pred_check_branch
          %187 = sbr.rel (%p185) target = $region28
        $region27: #{tpu_custom_call.1} parent=23 // pred_region
          %s188 = sand.u32 %s63, 1
          %s189 = scalar_lea.sflag [#allocation4], %s188
          %s190 = sand.u32 %s63, 1
          %s191 = smul.addr %s190, 8
          %s192 = scalar_lea.vmem [#allocation3], %s191
          %s194 = ssub.s32 128, 128
          %195 = vsyncadd %s189, %s194
          %s196 = smul.addr %s25, 2
          %s197 = sadd.s32 %s26, %s196
          %s198 = smul.addr %s197, 32
          %s199 = scalar_lea.hbm %s1, %s198
          %s200 = sshll.u32 %s192, 4
          %s201 = int_to_ptr.vmem [resolvable:$true] %s200
          %206 = dma.hbm_to_vmem [thread:$0]  %s199, 128, %s201, %s189, 64, 32, 2
        $region28: #{tpu_custom_call.1} parent=23 // pred_fallthru
          _
        // Predicated region
        $region29: #{tpu_custom_call.1} parent=23 // pred_check
          %p207 = pneg %p99
        $region30: #{tpu_custom_call.1} parent=23 // pred_check_branch
          %209 = sbr.rel (%p207) target = $region32
        $region31: #{tpu_custom_call.1} parent=23 // pred_region
          %s210 = sand.u32 %s18, 1
          %s211 = scalar_lea.sflag [#allocation7], %s210
          %s212 = sand.u32 %s89, 1
          %s213 = smul.addr %s212, 16
          %s214 = scalar_lea.vmem [#allocation6], %s213
          %s216 = ssub.s32 256, 256
          %217 = vsyncadd %s211, %s216
          %s218 = smul.addr %s26, 128
          %s219 = scalar_lea.hbm %s2, %s218
          %s220 = sshll.u32 %s214, 4
          %s221 = int_to_ptr.vmem [resolvable:$true] %s220
          %226 = dma.hbm_to_vmem [thread:$0]  %s219, 256, %s221, %s211, 256, 128, 8
        $region32: #{tpu_custom_call.1} parent=23 // pred_fallthru
          _
      $region24: #{tpu_custom_call.1} parent=5 // pred_fallthru
        _
      %p227 = scmp.le.s32.totalorder 1, %s18
      %p228 = scmp.lt.s32.totalorder %s18, 3
      %p229 = pnand %p227, %p228
      %p230 = pneg %p229
      // Predicated region
      $region33: #{tpu_custom_call.1} parent=5 // pred_check
        _
      $region34: #{tpu_custom_call.1} parent=5 // pred_check_branch
        %232 = sbr.rel (%p229) target = $region36
      $region35: #{tpu_custom_call.1} parent=5 // pred_region
        %s233 = ssub.s32 %s18, 1
        %s234 = sand.u32 %s66, 1
        %s235 = scalar_lea.sflag [#allocation4], %s234
        %s236 = sand.u32 %s66, 1
        %s237 = smul.addr %s236, 8
        %s238 = scalar_lea.vmem [#allocation3], %s237
        // Predicated region
        $region37: #{tpu_custom_call.1} parent=35 // pred_check
          %p239 = pneg %p79
        $region38: #{tpu_custom_call.1} parent=35 // pred_check_branch
          %241 = sbr.rel (%p239) target = $region40
        $region39: #{tpu_custom_call.1} parent=35 // pred_region
          %242 = dma.done %s235, 128
        $region40: #{tpu_custom_call.1} parent=35 // pred_fallthru
          _
        %s243 = sand.u32 %s23, 1
        %s244 = scalar_lea.sflag [#allocation7], %s243
        %s245 = sand.u32 %s92, 1
        %s246 = smul.addr %s245, 16
        %s247 = scalar_lea.vmem [#allocation6], %s246
        // Predicated region
        $region41: #{tpu_custom_call.1} parent=35 // pred_check
          %p248 = pneg %p105
        $region42: #{tpu_custom_call.1} parent=35 // pred_check_branch
          %250 = sbr.rel (%p248) target = $region44
        $region43: #{tpu_custom_call.1} parent=35 // pred_region
          %251 = dma.done %s244, 256
        $region44: #{tpu_custom_call.1} parent=35 // pred_fallthru
          _
        // Predicated region
        $region45: #{tpu_custom_call.1} parent=35 // pred_check
          %p252 = pneg %p126
        $region46: #{tpu_custom_call.1} parent=35 // pred_check_branch
          %254 = sbr.rel (%p252) target = $region48
        $region47: #{tpu_custom_call.1} parent=35 // pred_region
          %255 = dma.done [#allocation7], 16
        $region48: #{tpu_custom_call.1} parent=35 // pred_fallthru
          _
        %p256 = pneg %p51
        %p257 = pneg %p48
        %s258 = sand.u32 %s66, 1
        %s259 = scalar_lea.sflag [#allocation4], %s258
        %s260 = sand.u32 %s66, 1
        %s261 = smul.addr %s260, 8
        %s262 = scalar_lea.vmem [#allocation3], %s261
        %p263 = pneg %p79
        %p264 = pneg %p76
        %s265 = sand.u32 %s23, 1
        %s266 = scalar_lea.sflag [#allocation7], %s265
        %s267 = sand.u32 %s92, 1
        %s268 = smul.addr %s267, 16
        %s269 = scalar_lea.vmem [#allocation6], %s268
        %p270 = pneg %p105
        %p271 = pneg %p102
        %p272 = pneg %p126
        %p273 = pneg %p123
        %p274 = pneg %p152
        %p275 = pneg %p149
        %p276 = scmp.eq.s32.totalorder %s28, 0
        // Predicated region
        $region49: #{tpu_custom_call.1} parent=35 // pred_check
          %p277 = pneg %p276
        $region50: #{tpu_custom_call.1} parent=35 // pred_check_branch
          %279 = sbr.rel (%p277) target = $region52
        $region51: #{tpu_custom_call.1} parent=35 // pred_region
          %v280 = vld [vmem:[#allocation8] sm:$0x1]
          %v282 = vlaneseq
          %v283 = vshrl.u32 %v282, 7
          %v284 = vsub.s32 0, %v283
          %v285 = vrot.slane %v280, %v284
          %vm287 = vcmask 74752
          %288 = vst.msk [vmem:[#allocation9] sm:$0x3] %vm287, %v285
        $region52: #{tpu_custom_call.1} parent=35 // pred_fallthru
          _
        %s289 = sld [smem:[#allocation2]]
        %v290 = vld [vmem:[%s238] sm:$0x3]
        %s291 = scalar_lea.vmem %s238, 2 [#allocation3]
        %v292 = vld [vmem:[%s291] sm:$0x3]
        %s293 = scalar_lea.vmem %s238, 4 [#allocation3]
        %v294 = vld [vmem:[%s293] sm:$0x3]
        %s295 = scalar_lea.vmem %s238, 6 [#allocation3]
        %v296 = vld [vmem:[%s295] sm:$0x3]
        %v297 = vmax.f32 %v290, %v292
        %v298 = vmax.f32 %v294, %v296
        %v299 = vmax.f32 %v297, %v298
        %v300 = vadd.f32 %v290, %v292
        %v301 = vadd.f32 %v300, %v294
        %v302 = vadd.f32 %v301, %v296
        %v303 = vmul.f32 %v302, 0.25
        %v304 = vsub.f32 %v299, %v303
        %v305 = vstv %s289
        %v306 = vmul.f32 %v305, %v304
        %v307 = vadd.f32 %v303, %v306
        %v308 = vld [vmem:[#allocation9] sm:$0x3]
        %v309 = vld [vmem:[%s247] sm:$0xff]
        %v310 = vld [vmem:[%s247 + $0x8] sm:$0x3]
        %311 = vmatprep.subr.mxu0 0.0
        %312 = vmatpush1.xpose.msra.mxu0 %v309
        %313 = vmatprep.subr.mxu0 0.0
        %314 = vmatpush1.xpose.msra.mxu0 %v310
        %315 = vmatprep.subr.mxu0 0.0
        %316 = vmatpush1.xpose.msra.mxu0 0.0
        %317 = vmatprep.subr.mxu0 0.0
        %318 = vmatpush1.xpose.msra.mxu0 0.0
        %319 = vmatprep.subr.mxu0 0.0
        %320 = vmatpush1.xpose.msra.mxu0 0.0
        %321 = vmatprep.subr.mxu0 0.0
        %322 = vmatpush1.xpose.msra.mxu0 0.0
        %323 = vmatprep.subr.mxu0 0.0
        %324 = vmatpush1.xpose.msra.mxu0 0.0
        %325 = vmatprep.subr.mxu0 0.0
        %326 = vmatpush1.xpose.msra.mxu0 0.0
        %327 = vmatprep.subr.mxu0 0.0
        %328 = vmatpush1.xpose.msra.mxu0 0.0
        %329 = vmatprep.subr.mxu0 0.0
        %330 = vmatpush1.xpose.msra.mxu0 0.0
        %331 = vmatprep.subr.mxu0 0.0
        %332 = vmatpush1.xpose.msra.mxu0 0.0
        %333 = vmatprep.subr.mxu0 0.0
        %334 = vmatpush1.xpose.msra.mxu0 0.0
        %335 = vmatprep.subr.mxu0 0.0
        %336 = vmatpush1.xpose.msra.mxu0 0.0
        %337 = vmatprep.subr.mxu0 0.0
        %338 = vmatpush1.xpose.msra.mxu0 0.0
        %339 = vmatprep.subr.mxu0 0.0
        %340 = vmatpush1.xpose.msra.mxu0 0.0
        %341 = vmatprep.subr.mxu0 0.0
        %342 = vmatpush1.xpose.msra.mxu0 0.0
        %343 = vmatprep.subr.mxu0 0.0
        %344 = vmatpush1.xpose.msra.mxu0 0.0
        %345 = vmatprep.subr.mxu0 0.0
        %346 = vmatpush1.xpose.msra.mxu0 0.0
        %347 = vmatprep.subr.mxu0 0.0
        %348 = vmatpush1.xpose.msra.mxu0 0.0
        %349 = vmatprep.subr.mxu0 0.0
        %350 = vmatpush1.xpose.msra.mxu0 0.0
        %351 = vmatprep.subr.mxu0 0.0
        %352 = vmatpush1.xpose.msra.mxu0 0.0
        %353 = vmatprep.subr.mxu0 0.0
        %354 = vmatpush1.xpose.msra.mxu0 0.0
        %355 = vmatprep.subr.mxu0 0.0
        %356 = vmatpush1.xpose.msra.mxu0 0.0
        %357 = vmatprep.subr.mxu0 0.0
        %358 = vmatpush1.xpose.msra.mxu0 0.0
        %359 = vmatprep.subr.mxu0 0.0
        %360 = vmatpush1.xpose.msra.mxu0 0.0
        %361 = vmatprep.subr.mxu0 0.0
        %362 = vmatpush1.xpose.msra.mxu0 0.0
        %363 = vmatprep.subr.mxu0 0.0
        %364 = vmatpush1.xpose.msra.mxu0 0.0
        %365 = vmatprep.subr.mxu0 0.0
        %366 = vmatpush1.xpose.msra.mxu0 0.0
        %367 = vmatprep.subr.mxu0 0.0
        %368 = vmatpush1.xpose.msra.mxu0 0.0
        %369 = vmatprep.subr.mxu0 0.0
        %370 = vmatpush1.xpose.msra.mxu0 0.0
        %371 = vmatprep.subr.mxu0 0.0
        %372 = vmatpush1.xpose.msra.mxu0 0.0
        %373 = vmatprep.subr.mxu0 0.0
        %374 = vmatpush1.xpose.msra.mxu0 0.0
        %375 = vmatprep.mubr.f32.mxu0 0.0
        %376 = vmatmul.mubr.f32.gmra.mrb[0].mxu0 %v307
        %v377 = vpop.f32.mrb[0].mxu0
        %v378 = vadd.f32 0.0, %v377
        %v379 = vpop.f32.mrb[0].mxu0
        %380 = vdwg.mxu0
        %v381 = vadd.f32 %v308, %v378
        %vm382 = vcmask 74752
        %383 = vst.msk [vmem:[#allocation9] sm:$0x3] %vm382, %v381
        // Predicated region
        $region53: #{tpu_custom_call.1} parent=35 // pred_check
          %p384 = pneg %p149
        $region54: #{tpu_custom_call.1} parent=35 // pred_check_branch
          %386 = sbr.rel (%p384) target = $region56
        $region55: #{tpu_custom_call.1} parent=35 // pred_region
          %s388 = ssub.s32 32, 32
          %389 = vsyncadd [#allocation5], %s388
          %s390 = smul.addr %s27, 32
          %s391 = scalar_lea.hbm %s4, %s390
          %s393 = sshll.u32 [#allocation9], 4
          %s394 = int_to_ptr.vmem [resolvable:$true] %s393
          %396 = dma.vmem_to_hbm [thread:$0]  %s394, 32, %s391, [#allocation5]
        $region56: #{tpu_custom_call.1} parent=35 // pred_fallthru
          _
        // Predicated region
        $region57: #{tpu_custom_call.1} parent=35 // pred_check
          %p397 = pneg %p149
        $region58: #{tpu_custom_call.1} parent=35 // pred_check_branch
          %399 = sbr.rel (%p397) target = $region60
        $region59: #{tpu_custom_call.1} parent=35 // pred_region
          %400 = dma.done [#allocation5], 32
        $region60: #{tpu_custom_call.1} parent=35 // pred_fallthru
          _
      $region36: #{tpu_custom_call.1} parent=5 // pred_fallthru
        _
      %p401 = scmp.le.s32.totalorder 2, %s18
      // Predicated region
      $region61: #{tpu_custom_call.1} parent=5 // pred_check
        %p402 = pneg %p401
      $region62: #{tpu_custom_call.1} parent=5 // pred_check_branch
        %404 = sbr.rel (%p402) target = $region64
      $region63: #{tpu_custom_call.1} parent=5 // pred_region
        %s405 = ssub.s32 %s18, 2
      $region64: #{tpu_custom_call.1} parent=5 // pred_fallthru
        _
    $region6: #{tpu_custom_call.1} parent=1 // loop_footer
      %s22 = sadd.s32 1, %s18
    $region7: #{tpu_custom_call.1} parent=1 // loop_footer_branch
      %17 = sbr.rel target = $region3
    $region8: #{tpu_custom_call.1} parent=1 // loop_exit
      _
    %406 = vsyncpa [#allocation4], 1
    %s407 = scalar_lea.sflag [#allocation4], 1
    %408 = vsyncpa %s407, 1
    %409 = vsyncpa [#allocation7], 1
    %s410 = scalar_lea.sflag [#allocation7], 1
    %411 = vsyncpa %s410, 1
    %412 = vsyncpa [#allocation5], 1
    %s413 = scalar_lea.sflag [#allocation5], 1
    %414 = vsyncpa %s413, 1

</llo_original>
